<compile_context>
chip_gen: v7x
topology: tpu7x:2x2x1
jax: 0.10.0
libtpu: 0.0.40
codegen_flags: <defaults>
</compile_context>

<pallas_src>
import functools

import jax
import jax.numpy as jnp
from jax import lax
from jax.experimental import pallas as pl
from jax.experimental.pallas import tpu as pltpu


# ---------------------------------------------------------------------------
# Kernel 1: fused QKV projection over a row tile of the flattened (B*N, D) x.
#   x:(TM, D)  w_qkv:(D, 3*inner)  ->  qkv:(TM, 3*inner)   (one wide matmul)
# ---------------------------------------------------------------------------
def _qkv_kernel(x_ref, w_ref, qkv_ref):
    qkv_ref[...] = jnp.dot(
        x_ref[...], w_ref[...], preferred_element_type=jnp.float32
    ).astype(qkv_ref.dtype)


# ---------------------------------------------------------------------------
# Kernel 2: fused attention core + output projection for one (batch, q-tile).
#   q:(TQ, inner)  k,v:(N, inner)  w_out:(inner, D)  b_out:(1, D)
#   -> out:(TQ, D)   [and optionally attn:(heads, TQ, N)]
# Heads are processed inside the kernel so the HBM layout stays lane-dense.
# The softmax scale is already folded into q (via the projection weights).
# ---------------------------------------------------------------------------
def _attn_body(q_ref, k_ref, v_ref, wout_ref, bout_ref, out_ref, attn_ref, *,
               heads, dim_head):
    q = q_ref[...]                       # (TQ, inner), input dtype (bf16 fast path)
    k = k_ref[...]                       # (N,  inner)
    v = v_ref[...]                       # (N,  inner)
    wout = wout_ref[...]                 # (inner, D)

    o_heads = []
    for h in range(heads):               # static, short loop
        lo = h * dim_head
        hi = lo + dim_head
        qh = q[:, lo:hi]                 # (TQ, Dh)
        kh = k[:, lo:hi]                 # (N,  Dh)
        vh = v[:, lo:hi]                 # (N,  Dh)

        # q @ k^T via dot_general contracting the last dims (no .T relayout);
        # operands stay in input dtype, accumulation in f32 on the MXU.
        dots = lax.dot_general(qh, kh, (((1,), (1,)), ((), ())),
                               preferred_element_type=jnp.float32)   # (TQ, N) f32

        # numerically stable softmax over the key axis (f32 on the VPU/EUP)
        dots = dots - jnp.max(dots, axis=-1, keepdims=True)
        e = jnp.exp(dots)
        denom = jnp.sum(e, axis=-1, keepdims=True)

        if attn_ref is not None:
            # Exact division: these probabilities are a user-visible output.
            p = e / denom
            attn_ref[h, :, :] = p.astype(attn_ref.dtype)
            oh = jnp.dot(p.astype(v.dtype), vh,
                         preferred_element_type=jnp.float32)         # (TQ, Dh)
        else:
            # Defer normalization past P@V: scaling (TQ, Dh) is cheaper than
            # scaling (TQ, N), and the approx reciprocal stays internal.
            oh = jnp.dot(e.astype(v.dtype), vh,
                         preferred_element_type=jnp.float32)         # (TQ, Dh)
            oh = oh * pl.reciprocal(denom, approx=True)
        o_heads.append(oh)

    # Single output projection with K = inner (full MXU contraction depth).
    o_cat = jnp.concatenate(o_heads, axis=-1)                        # (TQ, inner) f32
    acc = jnp.dot(o_cat.astype(wout.dtype), wout,
                  preferred_element_type=jnp.float32)                # (TQ, D) f32
    out_ref[...] = (acc + bout_ref[...].astype(jnp.float32)).astype(out_ref.dtype)


def _attn_kernel_probs(q_ref, k_ref, v_ref, wout_ref, bout_ref,
                       out_ref, attn_ref, *, heads, dim_head):
    _attn_body(q_ref, k_ref, v_ref, wout_ref, bout_ref, out_ref, attn_ref,
               heads=heads, dim_head=dim_head)


def _attn_kernel_noprobs(q_ref, k_ref, v_ref, wout_ref, bout_ref,
                         out_ref, *, heads, dim_head):
    _attn_body(q_ref, k_ref, v_ref, wout_ref, bout_ref, out_ref, None,
               heads=heads, dim_head=dim_head)


# ---------------------------------------------------------------------------
# Tiling / VMEM helpers
# ---------------------------------------------------------------------------
def _sublane_multiple(dtype):
    # f32: 8, bf16: 16, int8/fp8: 32 (sub-32-bit dtypes pack along sublanes).
    return max(8, 32 // jnp.dtype(dtype).itemsize)


def _largest_tile(n, cap, sub):
    """Largest tile <= cap that divides n and is sublane-aligned (or == n)."""
    for t in range(min(n, cap), 0, -1):
        if n % t == 0 and (t % sub == 0 or t == n):
            return t
    return n


def _vmem_capacity_bytes():
    try:
        info = pltpu.get_tpu_info()
        cap = getattr(info, "vmem_capacity_bytes", None)
        if cap:
            return int(cap)
    except Exception:
        pass
    return 64 * 1024 * 1024   # conservative default (v7x per-core figure)


def _pick_tq(n, inner, d, heads, in_bytes, attn_bytes, sub, budget, cap=256):
    """Largest q-tile whose per-step VMEM estimate fits the budget."""
    cands = [t for t in range(min(n, cap), 0, -1)
             if n % t == 0 and (t % sub == 0 or t == n)]
    if not cands:
        # TODO(synk): pad N when it has no sublane-aligned divisor.
        cands = [n]
    # Blocks constant along the inner grid axis still get 2 buffers by default.
    fixed = (2 * 2 * n * inner * in_bytes      # K, V (full sequence, 2 bufs each)
             + 2 * inner * d * in_bytes        # w_out
             + 2 * 2 * d * in_bytes)           # b_out
    for t in cands:
        per = (2 * t * inner * in_bytes                       # q tile
               + 2 * t * d * in_bytes                         # out tile
               + 2 * heads * t * n * attn_bytes               # attn out (0 if skipped)
               + 8 * t * n * 4                                # f32 softmax temps
               + 3 * t * inner * 4)                           # per-head outputs / o_cat
        if fixed + per <= budget:
            return t
    return cands[-1]


# ---------------------------------------------------------------------------
# Python wrapper
# ---------------------------------------------------------------------------
def attention_forward(x, params, *, heads, dim_head, return_attn=True,
                      attn_dtype=None):
    """Self-attention forward. x: (B, N, D). Returns (out (B,N,D), attn|None).

    attn_dtype: dtype for the returned probability map (default x.dtype).
    Pass jnp.bfloat16 to halve the O(N^2) HBM writeback when fidelity of the
    visualization tensor is not critical.
    """
    B, N, D = x.shape
    inner = heads * dim_head
    scale = dim_head ** (-0.5)
    BN = B * N
    dtype = x.dtype
    in_bytes = jnp.dtype(dtype).itemsize
    sub = _sublane_multiple(dtype)

    if attn_dtype is None:
        attn_dtype = dtype
    attn_bytes = jnp.dtype(attn_dtype).itemsize if return_attn else 0

    # One-time weight transforms (no per-step cost):
    #   * fold the softmax scale into the Q columns of the packed QKV weight.
    w_qkv = jnp.asarray(params["w_qkv"])                  # (D, 3*inner) == to_qkv.weight.T
    w_qkv = w_qkv.at[:, :inner].multiply(scale)
    w_out = jnp.asarray(params["w_out"])                  # (inner, D)   == to_out[0].weight.T
    b_out = jnp.asarray(params["b_out"]).reshape(1, D)    # (1, D)

    vmem_cap = _vmem_capacity_bytes()
    vmem_limit = min(int(vmem_cap * 0.9), 128 * 1024 * 1024)
    vmem_budget = int(vmem_cap * 0.6)

    # ---- 1) fused QKV projection: row-tiled over the flattened (B*N, D) x ----
    x2 = x.reshape(BN, D)                                  # contiguous reshape, no transpose
    TM = _largest_tile(BN, 512, sub)
    qkv2 = pl.pallas_call(
        _qkv_kernel,
        out_shape=jax.ShapeDtypeStruct((BN, 3 * inner), dtype),
        grid_spec=pltpu.PrefetchScalarGridSpec(
            num_scalar_prefetch=0,
            grid=(BN // TM,),
            in_specs=[pl.BlockSpec((TM, D), lambda i: (i, 0)),
                      pl.BlockSpec((D, 3 * inner), lambda i: (0, 0))],   # weight resident
            out_specs=pl.BlockSpec((TM, 3 * inner), lambda i: (i, 0)),   # lane-dense slab
        ),
        compiler_params=pltpu.CompilerParams(
            dimension_semantics=("parallel",),
            vmem_limit_bytes=vmem_limit),
    )(x2, w_qkv)

    qkv3 = qkv2.reshape(B, N, 3 * inner)                   # heads stay packed in lanes

    # q/k/v split: via last-dim BLOCK OFFSETS into the single slab when the
    # inner width is lane-aligned (no copies); otherwise a one-time XLA slice.
    if inner % 128 == 0:
        q_in = k_in = v_in = qkv3
        qc, kc, vc = 0, 1, 2
    else:
        q_in = qkv3[:, :, 0 * inner:1 * inner]
        k_in = qkv3[:, :, 1 * inner:2 * inner]
        v_in = qkv3[:, :, 2 * inner:3 * inner]
        qc = kc = vc = 0

    # ---- 2) fused attention + output projection: grid (B, N // TQ) -----------
    # K/V blocks are constant along the q-tile axis, so they are fetched once
    # per batch; TQ is sized from the per-generation VMEM budget.
    TQ = _pick_tq(N, inner, D, heads, in_bytes, attn_bytes, sub, vmem_budget)

    in_specs = [
        pl.BlockSpec((None, TQ, inner), lambda b, qi: (b, qi, qc)),   # q tile
        pl.BlockSpec((None, N, inner), lambda b, qi: (b, 0, kc)),     # k (full seq)
        pl.BlockSpec((None, N, inner), lambda b, qi: (b, 0, vc)),     # v (full seq)
        pl.BlockSpec((inner, D), lambda b, qi: (0, 0)),               # w_out
        pl.BlockSpec((1, D), lambda b, qi: (0, 0)),                   # b_out
    ]
    out_spec = pl.BlockSpec((None, TQ, D), lambda b, qi: (b, qi, 0))
    cparams = pltpu.CompilerParams(
        dimension_semantics=("parallel", "parallel"),
        vmem_limit_bytes=vmem_limit)

    if return_attn:
        out, attn = pl.pallas_call(
            functools.partial(_attn_kernel_probs, heads=heads, dim_head=dim_head),
            out_shape=(
                jax.ShapeDtypeStruct((B, N, D), dtype),               # projected out
                jax.ShapeDtypeStruct((B, heads, N, N), attn_dtype),   # weights
            ),
            grid_spec=pltpu.PrefetchScalarGridSpec(
                num_scalar_prefetch=0,
                grid=(B, N // TQ),
                in_specs=in_specs,
                out_specs=(
                    out_spec,
                    pl.BlockSpec((None, heads, TQ, N), lambda b, qi: (b, 0, qi, 0)),
                ),
            ),
            compiler_params=cparams,
        )(q_in, k_in, v_in, w_out, b_out)
        return out, attn

    out = pl.pallas_call(
        functools.partial(_attn_kernel_noprobs, heads=heads, dim_head=dim_head),
        out_shape=jax.ShapeDtypeStruct((B, N, D), dtype),
        grid_spec=pltpu.PrefetchScalarGridSpec(
            num_scalar_prefetch=0,
            grid=(B, N // TQ),
            in_specs=in_specs,
            out_specs=out_spec,
        ),
        compiler_params=cparams,
    )(q_in, k_in, v_in, w_out, b_out)
    return out, None


# ---------------------------------------------------------------------------
# Pure-JAX reference (mirrors the PyTorch module) for a sanity check
# ---------------------------------------------------------------------------
def attention_ref(x, params, *, heads, dim_head):
    B, N, D = x.shape
    inner = heads * dim_head
    scale = dim_head ** (-0.5)
    with jax.default_matmul_precision("highest"):
        qkv = x @ params["w_qkv"]
        q, k, v = jnp.split(qkv, 3, axis=-1)

        def to_heads(t):
            return t.reshape(B, N, heads, dim_head).transpose(0, 2, 1, 3)

        q, k, v = to_heads(q), to_heads(k), to_heads(v)
        dots = jnp.einsum("bhnd,bhmd->bhnm", q, k) * scale
        attn = jax.nn.softmax(dots, axis=-1)
        out = jnp.einsum("bhnm,bhmd->bhnd", attn, v)
        out = out.transpose(0, 2, 1, 3).reshape(B, N, inner)
        out = out @ params["w_out"] + params["b_out"]
    return out, attn


if __name__ == "__main__":
    # small, module-consistent shapes (inner = heads*dim_head = 128, lane-aligned)
    B, N, DIM = 2, 16, 32
    HEADS, DIM_HEAD = 4, 32
    INNER = HEADS * DIM_HEAD

    key = jax.random.PRNGKey(0)
    kx, kqkv, kwo, kbo = jax.random.split(key, 4)

    x = jax.random.normal(kx, (B, N, DIM), dtype=jnp.float32)
    params = {
        "w_qkv": jax.random.normal(kqkv, (DIM, 3 * INNER), jnp.float32) * 0.05,
        "w_out": jax.random.normal(kwo, (INNER, DIM), jnp.float32) * 0.05,
        "b_out": jax.random.normal(kbo, (DIM,), jnp.float32) * 0.05,
    }

    out, attn = attention_forward(x, params, heads=HEADS, dim_head=DIM_HEAD,
                                  return_attn=True)
    jax.block_until_ready((out, attn))

    out_r, attn_r = attention_ref(x, params, heads=HEADS, dim_head=DIM_HEAD)
    assert out.shape == (B, N, DIM) and attn.shape == (B, HEADS, N, N)
    # Probabilities path uses exact softmax division -> tight-ish tolerance
    # (residual difference is MXU matmul precision).
    assert jnp.allclose(out, out_r, atol=5e-3, rtol=5e-3)
    assert jnp.allclose(attn, attn_r, atol=5e-3, rtol=5e-3)

    # no-probabilities fast path (skips the O(N^2) writeback; internal
    # normalization uses pl.reciprocal(approx=True), hence looser tolerance).
    out2, none_attn = attention_forward(x, params, heads=HEADS,
                                        dim_head=DIM_HEAD, return_attn=False)
    jax.block_until_ready(out2)
    assert none_attn is None
    assert jnp.allclose(out2, out_r, atol=1e-2, rtol=1e-2)

    print("KERNEL_OK")
</pallas_src>

<mosaic_0001>
module attributes {stable_mosaic.version = 11 : i64} {
  func.func @_qkv_kernel(%arg0: i32, %arg1: memref<32x32xf32, #tpu.memory_space<vmem>>, %arg2: memref<32x384xf32, #tpu.memory_space<vmem>>, %arg3: memref<32x384xf32, #tpu.memory_space<vmem>>) attributes {dimension_semantics = [#tpu.dimension_semantics<parallel>], iteration_bounds = array<i64: 1>, scalar_prefetch = 0 : i64, scratch_operands = 0 : i64, tpu.core_type = #tpu.core_type<tc>, window_params = [{transform_indices = @transform_0, window_bounds = array<i64: 32, 32>}, {pipeline_mode = #tpu.pipeline_mode<synchronous>, transform_indices = @transform_1, window_bounds = array<i64: 32, 384>}, {transform_indices = @transform_2, window_bounds = array<i64: 32, 384>}]} {
    %c0 = arith.constant 0 : index
    %c0_0 = arith.constant 0 : index
    %0 = vector.load %arg1[%c0, %c0_0] : memref<32x32xf32, #tpu.memory_space<vmem>>, vector<32x32xf32>
    %c0_1 = arith.constant 0 : index
    %c0_2 = arith.constant 0 : index
    %1 = vector.load %arg2[%c0_1, %c0_2] : memref<32x384xf32, #tpu.memory_space<vmem>>, vector<32x384xf32>
    %cst = arith.constant dense<0.000000e+00> : vector<32x384xf32>
    %2 = tpu.matmul %0, %1, %cst {dimension_numbers = #tpu.dot_dimension_numbers<[1], [0], [0], [1], [0, 0, 1, 1], [], []>} : vector<32x32xf32>, vector<32x384xf32>, vector<32x384xf32> -> vector<32x384xf32>
    %c0_3 = arith.constant 0 : index
    %c0_4 = arith.constant 0 : index
    %3 = vector.load %arg3[%c0_3, %c0_4] : memref<32x384xf32, #tpu.memory_space<vmem>>, vector<32x384xf32>
    tpu.vector_store %arg3[%c0_3, %c0_4], %2 {strides = array<i32>} : memref<32x384xf32, #tpu.memory_space<vmem>>, vector<32x384xf32>,
    return
  }
  func.func @transform_0(%arg0: i32) -> (i32, i32) {
    %c0_i32 = arith.constant 0 : i32
    %c0_i32_0 = arith.constant 0 : i32
    return %arg0, %c0_i32 : i32, i32
  }
  func.func @transform_1(%arg0: i32) -> (i32, i32) {
    %c0_i32 = arith.constant 0 : i32
    %c0_i32_0 = arith.constant 0 : i32
    %c0_i32_1 = arith.constant 0 : i32
    return %c0_i32, %c0_i32_0 : i32, i32
  }
  func.func @transform_2(%arg0: i32) -> (i32, i32) {
    %c0_i32 = arith.constant 0 : i32
    %c0_i32_0 = arith.constant 0 : i32
    return %arg0, %c0_i32 : i32, i32
  }
}

</mosaic_0001>

<llo_original>
// kernel: tpu_custom_call.1
$region0: #{tpu_custom_call.1}
  #allocation0 [shape = 'u32[]', space=smem, size = 0x4, offset = 0x4, fixed_abs, tag = 'smem constant byte address 0x4 - core index']
  #allocation1 [shape = 'u32[144,128]{1,0:T(1,128)}', space=vmem, size = 0x12000, scoped, tag = 'internal scratch']
  %s0 = inlined_call_operand.hbm [shape: f32[32,32], index: 0, kind: input, shape index: {}]
  %s1 = inlined_call_operand.hbm [shape: f32[32,384], index: 1, kind: input, shape index: {}]
  %s2 = inlined_call_operand.hbm [shape: f32[32,384], index: 2, kind: output, shape index: {}]
  %s3 = sld [smem:[#allocation0]]
  $region26: #{tpu_custom_call.1} parent=0
    _
  %s5 = ssub.s32 1, %s3
  %s6 = scalar_select 0, %s5, %s3
  $region1: #{tpu_custom_call.1} parent=0
    #allocation2 [shape = 'u8[16384]{0}', space=vmem, size = 0x4000, scoped, tag = 'input window, operand 0, single buffered']
    #allocation3 [shape = 's32[1]{0}', space=sflag, size = 0x4, scoped, tag = 'scoped memory for tpu_custom_call.1']
    #allocation4 [shape = 's32[1]{0}', space=sflag, size = 0x4, scoped, tag = 'scoped memory for tpu_custom_call.1']
    #allocation5 [shape = 'u8[49152]{0}', space=vmem, size = 0xc000, scoped, tag = 'input window, operand 1, single buffered']
    #allocation6 [shape = 's32[1]{0}', space=sflag, size = 0x4, scoped, tag = 'scoped memory for tpu_custom_call.1']
    #allocation7 [shape = 'u8[49152]{0}', space=vmem, size = 0xc000, scoped, tag = 'output window, operand 0, single buffered']
    %7 = vsyncpa [#allocation3], 0
    %8 = vsyncpa [#allocation6], 0
    %9 = vsyncpa [#allocation4], 0
    // Predicated region
    $region2: #{tpu_custom_call.1} parent=1 // pred_check
      _
    $region3: #{tpu_custom_call.1} parent=1 // pred_check_branch
      %11 = sbr.rel (0) target = $region5
    $region4: #{tpu_custom_call.1} parent=1 // pred_region
      %s13 = ssub.s32 512, 512
      %14 = vsyncadd [#allocation3], %s13
      %s15 = sshll.u32 [#allocation2], 4
      %s16 = int_to_ptr.vmem [resolvable:$true] %s15
      %21 = dma.hbm_to_vmem [thread:$0]  %s0, 512, %s16, [#allocation3], 128, 128, 8
    $region5: #{tpu_custom_call.1} parent=1 // pred_fallthru
      _
    // Predicated region
    $region6: #{tpu_custom_call.1} parent=1 // pred_check
      _
    $region7: #{tpu_custom_call.1} parent=1 // pred_check_branch
      %23 = sbr.rel (0) target = $region9
    $region8: #{tpu_custom_call.1} parent=1 // pred_region
      %s25 = ssub.s32 1536, 1536
      %26 = vsyncadd [#allocation6], %s25
      %s27 = sshll.u32 [#allocation5], 4
      %s28 = int_to_ptr.vmem [resolvable:$true] %s27
      %33 = dma.hbm_to_vmem [thread:$0]  %s1, 1536, %s28, [#allocation6], 384, 384, 24
    $region9: #{tpu_custom_call.1} parent=1 // pred_fallthru
      _
    // Predicated region
    $region10: #{tpu_custom_call.1} parent=1 // pred_check
      _
    $region11: #{tpu_custom_call.1} parent=1 // pred_check_branch
      %35 = sbr.rel (0) target = $region13
    $region12: #{tpu_custom_call.1} parent=1 // pred_region
      %36 = dma.done [#allocation3], 512
    $region13: #{tpu_custom_call.1} parent=1 // pred_fallthru
      _
    // Predicated region
    $region14: #{tpu_custom_call.1} parent=1 // pred_check
      _
    $region15: #{tpu_custom_call.1} parent=1 // pred_check_branch
      %38 = sbr.rel (0) target = $region17
    $region16: #{tpu_custom_call.1} parent=1 // pred_region
      %39 = dma.done [#allocation6], 1536
    $region17: #{tpu_custom_call.1} parent=1 // pred_fallthru
      _
    %v40 = vld [vmem:[#allocation2] sm:$0xff]
    %v41 = vld [vmem:[#allocation2 + $0x8] sm:$0xff]
    %v42 = vld [vmem:[#allocation2 + $0x10] sm:$0xff]
    %v43 = vld [vmem:[#allocation2 + $0x18] sm:$0xff]
    %v44 = vld [vmem:[#allocation5] sm:$0xff]
    %v45 = vld [vmem:[#allocation5 + $0x8] sm:$0xff]
    %v46 = vld [vmem:[#allocation5 + $0x10] sm:$0xff]
    %v47 = vld [vmem:[#allocation5 + $0x18] sm:$0xff]
    %v48 = vld [vmem:[#allocation5 + $0x20] sm:$0xff]
    %v49 = vld [vmem:[#allocation5 + $0x28] sm:$0xff]
    %v50 = vld [vmem:[#allocation5 + $0x30] sm:$0xff]
    %v51 = vld [vmem:[#allocation5 + $0x38] sm:$0xff]
    %v52 = vld [vmem:[#allocation5 + $0x40] sm:$0xff]
    %v53 = vld [vmem:[#allocation5 + $0x48] sm:$0xff]
    %v54 = vld [vmem:[#allocation5 + $0x50] sm:$0xff]
    %v55 = vld [vmem:[#allocation5 + $0x58] sm:$0xff]
    %vm56 = vcmask 261120
    %v58 = vsel %vm56, %v40, 0
    %v61 = vsel %vm56, %v41, 0
    %v64 = vsel %vm56, %v42, 0
    %v67 = vsel %vm56, %v43, 0
    %69 = vmatprep.subr.mxu0 %v45
    %70 = vmatpush1.msra.mxu0 %v44
    %71 = vmatprep.subr.mxu0 %v48
    %72 = vmatpush1.msra.mxu0 %v47
    %73 = vmatprep.subr.mxu0 %v51
    %74 = vmatpush1.msra.mxu0 %v50
    %75 = vmatprep.subr.mxu0 %v54
    %76 = vmatpush1.msra.mxu0 %v53
    %77 = vmatprep.subr.mxu0 0.0
    %78 = vmatpush1.msra.mxu0 0.0
    %79 = vmatprep.subr.mxu0 0.0
    %80 = vmatpush1.msra.mxu0 0.0
    %81 = vmatprep.subr.mxu0 0.0
    %82 = vmatpush1.msra.mxu0 0.0
    %83 = vmatprep.subr.mxu0 0.0
    %84 = vmatpush1.msra.mxu0 0.0
    %85 = vmatprep.subr.mxu0 0.0
    %86 = vmatpush1.msra.mxu0 0.0
    %87 = vmatprep.subr.mxu0 0.0
    %88 = vmatpush1.msra.mxu0 0.0
    %89 = vmatprep.subr.mxu0 0.0
    %90 = vmatpush1.msra.mxu0 0.0
    %91 = vmatprep.subr.mxu0 0.0
    %92 = vmatpush1.msra.mxu0 0.0
    %93 = vmatprep.subr.mxu0 0.0
    %94 = vmatpush1.msra.mxu0 0.0
    %95 = vmatprep.subr.mxu0 0.0
    %96 = vmatpush1.msra.mxu0 0.0
    %97 = vmatprep.subr.mxu0 0.0
    %98 = vmatpush1.msra.mxu0 0.0
    %99 = vmatprep.subr.mxu0 0.0
    %100 = vmatpush1.msra.mxu0 0.0
    %101 = vmatprep.subr.mxu0 0.0
    %102 = vmatpush1.msra.mxu0 0.0
    %103 = vmatprep.subr.mxu0 0.0
    %104 = vmatpush1.msra.mxu0 0.0
    %105 = vmatprep.subr.mxu0 0.0
    %106 = vmatpush1.msra.mxu0 0.0
    %107 = vmatprep.subr.mxu0 0.0
    %108 = vmatpush1.msra.mxu0 0.0
    %109 = vmatprep.subr.mxu0 0.0
    %110 = vmatpush1.msra.mxu0 0.0
    %111 = vmatprep.subr.mxu0 0.0
    %112 = vmatpush1.msra.mxu0 0.0
    %113 = vmatprep.subr.mxu0 0.0
    %114 = vmatpush1.msra.mxu0 0.0
    %115 = vmatprep.subr.mxu0 0.0
    %116 = vmatpush1.msra.mxu0 0.0
    %117 = vmatprep.subr.mxu0 0.0
    %118 = vmatpush1.msra.mxu0 0.0
    %119 = vmatprep.subr.mxu0 0.0
    %120 = vmatpush1.msra.mxu0 0.0
    %121 = vmatprep.subr.mxu0 0.0
    %122 = vmatpush1.msra.mxu0 0.0
    %123 = vmatprep.subr.mxu0 0.0
    %124 = vmatpush1.msra.mxu0 0.0
    %125 = vmatprep.subr.mxu0 0.0
    %126 = vmatpush1.msra.mxu0 0.0
    %127 = vmatprep.subr.mxu0 0.0
    %128 = vmatpush1.msra.mxu0 0.0
    %129 = vmatprep.subr.mxu0 0.0
    %130 = vmatpush1.msra.mxu0 0.0
    %131 = vmatprep.subr.mxu0 0.0
    %132 = vmatpush1.msra.mxu0 0.0
    %133 = vmatprep.mubr.f32.mxu0 0.0
    %134 = vmatmul.mubr.f32.gmra.mrb[0].mxu0 %v58
    %v135 = vpop.f32.mrb[0].mxu0
    %v136 = vadd.f32 0.0, %v135
    %v137 = vpop.f32.mrb[0].mxu0
    %v138 = vadd.f32 0.0, %v137
    %139 = vmatprep.mubr.f32.mxu0 0.0
    %140 = vmatmul.mubr.f32.gmra.mrb[0].mxu0 %v61
    %v141 = vpop.f32.mrb[0].mxu0
    %v142 = vadd.f32 0.0, %v141
    %v143 = vpop.f32.mrb[0].mxu0
    %v144 = vadd.f32 0.0, %v143
    %145 = vmatprep.mubr.f32.mxu0 0.0
    %146 = vmatmul.mubr.f32.gmra.mrb[0].mxu0 %v64
    %v147 = vpop.f32.mrb[0].mxu0
    %v148 = vadd.f32 0.0, %v147
    %v149 = vpop.f32.mrb[0].mxu0
    %v150 = vadd.f32 0.0, %v149
    %151 = vmatprep.mubr.f32.mxu0 0.0
    %152 = vmatmul.mubr.f32.gmra.mrb[0].mxu0 %v67
    %v153 = vpop.f32.mrb[0].mxu0
    %v154 = vadd.f32 0.0, %v153
    %v155 = vpop.f32.mrb[0].mxu0
    %v156 = vadd.f32 0.0, %v155
    %157 = vdwg.mxu0
    %158 = vmatprep.subr.mxu0 0.0
    %159 = vmatpush1.msra.mxu0 %v46
    %160 = vmatprep.subr.mxu0 0.0
    %161 = vmatpush1.msra.mxu0 %v49
    %162 = vmatprep.subr.mxu0 0.0
    %163 = vmatpush1.msra.mxu0 %v52
    %164 = vmatprep.subr.mxu0 0.0
    %165 = vmatpush1.msra.mxu0 %v55
    %166 = vmatprep.subr.mxu0 0.0
    %167 = vmatpush1.msra.mxu0 0.0
    %168 = vmatprep.subr.mxu0 0.0
    %169 = vmatpush1.msra.mxu0 0.0
    %170 = vmatprep.subr.mxu0 0.0
    %171 = vmatpush1.msra.mxu0 0.0
    %172 = vmatprep.subr.mxu0 0.0
    %173 = vmatpush1.msra.mxu0 0.0
    %174 = vmatprep.subr.mxu0 0.0
    %175 = vmatpush1.msra.mxu0 0.0
    %176 = vmatprep.subr.mxu0 0.0
    %177 = vmatpush1.msra.mxu0 0.0
    %178 = vmatprep.subr.mxu0 0.0
    %179 = vmatpush1.msra.mxu0 0.0
    %180 = vmatprep.subr.mxu0 0.0
    %181 = vmatpush1.msra.mxu0 0.0
    %182 = vmatprep.subr.mxu0 0.0
    %183 = vmatpush1.msra.mxu0 0.0
    %184 = vmatprep.subr.mxu0 0.0
    %185 = vmatpush1.msra.mxu0 0.0
    %186 = vmatprep.subr.mxu0 0.0
    %187 = vmatpush1.msra.mxu0 0.0
    %188 = vmatprep.subr.mxu0 0.0
    %189 = vmatpush1.msra.mxu0 0.0
    %190 = vmatprep.subr.mxu0 0.0
    %191 = vmatpush1.msra.mxu0 0.0
    %192 = vmatprep.subr.mxu0 0.0
    %193 = vmatpush1.msra.mxu0 0.0
    %194 = vmatprep.subr.mxu0 0.0
    %195 = vmatpush1.msra.mxu0 0.0
    %196 = vmatprep.subr.mxu0 0.0
    %197 = vmatpush1.msra.mxu0 0.0
    %198 = vmatprep.subr.mxu0 0.0
    %199 = vmatpush1.msra.mxu0 0.0
    %200 = vmatprep.subr.mxu0 0.0
    %201 = vmatpush1.msra.mxu0 0.0
    %202 = vmatprep.subr.mxu0 0.0
    %203 = vmatpush1.msra.mxu0 0.0
    %204 = vmatprep.subr.mxu0 0.0
    %205 = vmatpush1.msra.mxu0 0.0
    %206 = vmatprep.subr.mxu0 0.0
    %207 = vmatpush1.msra.mxu0 0.0
    %208 = vmatprep.subr.mxu0 0.0
    %209 = vmatpush1.msra.mxu0 0.0
    %210 = vmatprep.subr.mxu0 0.0
    %211 = vmatpush1.msra.mxu0 0.0
    %212 = vmatprep.subr.mxu0 0.0
    %213 = vmatpush1.msra.mxu0 0.0
    %214 = vmatprep.subr.mxu0 0.0
    %215 = vmatpush1.msra.mxu0 0.0
    %216 = vmatprep.subr.mxu0 0.0
    %217 = vmatpush1.msra.mxu0 0.0
    %218 = vmatprep.subr.mxu0 0.0
    %219 = vmatpush1.msra.mxu0 0.0
    %220 = vmatprep.subr.mxu0 0.0
    %221 = vmatpush1.msra.mxu0 0.0
    %222 = vmatprep.mubr.f32.mxu0 0.0
    %223 = vmatmul.mubr.f32.gmra.mrb[0].mxu0 %v58
    %v224 = vpop.f32.mrb[0].mxu0
    %v225 = vadd.f32 0.0, %v224
    %v226 = vpop.f32.mrb[0].mxu0
    %227 = vmatprep.mubr.f32.mxu0 0.0
    %228 = vmatmul.mubr.f32.gmra.mrb[0].mxu0 %v61
    %v229 = vpop.f32.mrb[0].mxu0
    %v230 = vadd.f32 0.0, %v229
    %v231 = vpop.f32.mrb[0].mxu0
    %232 = vmatprep.mubr.f32.mxu0 0.0
    %233 = vmatmul.mubr.f32.gmra.mrb[0].mxu0 %v64
    %v234 = vpop.f32.mrb[0].mxu0
    %v235 = vadd.f32 0.0, %v234
    %v236 = vpop.f32.mrb[0].mxu0
    %237 = vmatprep.mubr.f32.mxu0 0.0
    %238 = vmatmul.mubr.f32.gmra.mrb[0].mxu0 %v67
    %v239 = vpop.f32.mrb[0].mxu0
    %v240 = vadd.f32 0.0, %v239
    %v241 = vpop.f32.mrb[0].mxu0
    %242 = vdwg.mxu0
    %243 = vst [vmem:[#allocation7] sm:$0xff] %v136
    %244 = vst [vmem:[#allocation7 + $0x8] sm:$0xff] %v138
    %245 = vst [vmem:[#allocation7 + $0x10] sm:$0xff] %v225
    %246 = vst [vmem:[#allocation7 + $0x18] sm:$0xff] %v142
    %247 = vst [vmem:[#allocation7 + $0x20] sm:$0xff] %v144
    %248 = vst [vmem:[#allocation7 + $0x28] sm:$0xff] %v230
    %249 = vst [vmem:[#allocation7 + $0x30] sm:$0xff] %v148
    %250 = vst [vmem:[#allocation7 + $0x38] sm:$0xff] %v150
    %251 = vst [vmem:[#allocation7 + $0x40] sm:$0xff] %v235
    %252 = vst [vmem:[#allocation7 + $0x48] sm:$0xff] %v154
    %253 = vst [vmem:[#allocation7 + $0x50] sm:$0xff] %v156
    %254 = vst [vmem:[#allocation7 + $0x58] sm:$0xff] %v240
    // Predicated region
    $region18: #{tpu_custom_call.1} parent=1 // pred_check
      _
    $region19: #{tpu_custom_call.1} parent=1 // pred_check_branch
      %256 = sbr.rel (0) target = $region21
    $region20: #{tpu_custom_call.1} parent=1 // pred_region
      %s258 = ssub.s32 1536, 1536
      %259 = vsyncadd [#allocation4], %s258
      %s260 = sshll.u32 [#allocation7], 4
      %s261 = int_to_ptr.vmem [resolvable:$true] %s260
      %266 = dma.vmem_to_hbm [thread:$0]  %s261, 1536, %s2, [#allocation4], 384, 384, 24
    $region21: #{tpu_custom_call.1} parent=1 // pred_fallthru
      _
    // Predicated region
    $region22: #{tpu_custom_call.1} parent=1 // pred_check
      _
    $region23: #{tpu_custom_call.1} parent=1 // pred_check_branch
      %268 = sbr.rel (0) target = $region25
    $region24: #{tpu_custom_call.1} parent=1 // pred_region
      %269 = dma.done [#allocation4], 1536
    $region25: #{tpu_custom_call.1} parent=1 // pred_fallthru
      _
    %270 = vsyncpa [#allocation3], 1
    %271 = vsyncpa [#allocation6], 1
    %272 = vsyncpa [#allocation4], 1

</llo_original>
